<compile_context>
chip_gen: v7x
topology: tpu7x:2x2x1
jax: 0.10.0
libtpu: 0.0.40
codegen_flags: <defaults>
</compile_context>

<pallas_src>
import jax
import jax.numpy as jnp
from jax.experimental import pallas as pl
from jax.experimental.pallas import tpu as pltpu

INPUT_SIZE = 25
HIDDEN_SIZE = 5
BATCH = 2

LANE = 128                            # lane width of a vreg
B_PAD = 8                             # f32 sublane granule
K_PAD = 128                           # padded contraction dim for [x | h | 1]
ONE_COL = INPUT_SIZE + HIDDEN_SIZE    # column 30 carries the constant 1 (bias row)
GATE_OFF = 32                         # lane offset of each gate inside the single tile


def lstm_cell_kernel(xh_ref, c_ref, w_ref, h_out_ref, c_out_ref):
    """One LSTMCell step, everything resident in VMEM.

    xh_ref    : (8, 128)   [x | h | 1 | 0-pad], batch rows 2..7 are zero
    c_ref     : (8, 128)   c0 in lanes 0..4, zero elsewhere
    w_ref     : (128, 128) packed [W_ih^T ; W_hh^T ; b_ih+b_hh], gate g at lanes
                [g*32, g*32+5) (i, f, g, o)
    h_out_ref : (8, 128)
    c_out_ref : (8, 128)
    """
    # Single fused matmul: all four gates land in one 128-lane result tile.
    gates = jnp.dot(xh_ref[...], w_ref[...],
                    preferred_element_type=jnp.float32)          # (8, 128)

    # Per-lane activation select: tanh for the g-gate lanes [64, 96), sigmoid else.
    lane = jax.lax.broadcasted_iota(jnp.int32, gates.shape, dimension=1)
    is_g = (lane >= 2 * GATE_OFF) & (lane < 3 * GATE_OFF)
    act = jnp.where(is_g, jnp.tanh(gates), jax.nn.sigmoid(gates))

    # Align each gate onto lanes 0..4 via XLU lane rotations (free slot here).
    i_al = act                                                    # i already at lane 0
    f_al = pltpu.roll(act, shift=LANE - 1 * GATE_OFF, axis=1)     # f: 32 -> 0
    g_al = pltpu.roll(act, shift=LANE - 2 * GATE_OFF, axis=1)     # g: 64 -> 0
    o_al = pltpu.roll(act, shift=LANE - 3 * GATE_OFF, axis=1)     # o: 96 -> 0

    c_new = f_al * c_ref[...] + i_al * g_al
    h_new = o_al * jnp.tanh(c_new)

    # Full-tile, unmasked stores; padding lanes/rows carry junk and are stripped
    # in the wrapper (only lanes 0..4 / rows 0..B are meaningful).
    h_out_ref[...] = h_new.astype(h_out_ref.dtype)
    c_out_ref[...] = c_new.astype(c_out_ref.dtype)


def pack_weights(params):
    """Pack (W_ih, W_hh, b_ih, b_hh) into ONE (128, 128) lane-aligned slab.

    Rows 0..24   : W_ih^T
    Rows 25..29  : W_hh^T
    Row  30      : b_ih + b_hh   (picked up by the constant-1 column of xh)
    Gate g lives at lanes [g*32, g*32+5); the rest is zero.

    Weights are static: call this ONCE at init and reuse the result.
    """
    w_ih, w_hh, b_ih, b_hh = params
    H = HIDDEN_SIZE
    blocks = []
    for g in range(4):
        blk = jnp.zeros((K_PAD, GATE_OFF), jnp.float32)
        blk = blk.at[:INPUT_SIZE, :H].set(
            w_ih[g * H:(g + 1) * H, :].T.astype(jnp.float32))
        blk = blk.at[INPUT_SIZE:ONE_COL, :H].set(
            w_hh[g * H:(g + 1) * H, :].T.astype(jnp.float32))
        blk = blk.at[ONE_COL, :H].set(
            (b_ih[g * H:(g + 1) * H] + b_hh[g * H:(g + 1) * H]).astype(jnp.float32))
        blocks.append(blk)
    return jnp.concatenate(blocks, axis=1)                        # (128, 128)


@jax.jit
def simple_lstm_forward(x, states, w_p):
    """Mirrors simple_LSTM.forward given a pre-packed weight slab.

    Returns (h', c'); the PyTorch module returns h'.
    """
    h0, c0 = states
    B = x.shape[0]

    # Pack [x | h | 1] into a sublane/lane-padded slab: one concat + one pad
    # (fuses into a single XLA fusion under jit — layout plumbing only).
    xh = jnp.concatenate(
        [x.astype(jnp.float32), h0.astype(jnp.float32), jnp.ones((B, 1), jnp.float32)],
        axis=1)                                                   # (B, 31)
    xh = jnp.pad(xh, ((0, B_PAD - B), (0, K_PAD - xh.shape[1])))  # (8, 128)
    c_p = jnp.pad(c0.astype(jnp.float32),
                  ((0, B_PAD - B), (0, LANE - HIDDEN_SIZE)))      # (8, 128)

    operands = (xh, c_p, w_p)
    in_specs = [
        pl.BlockSpec(a.shape, lambda *_, nd=a.ndim: (0,) * nd) for a in operands
    ]
    out_shape = (jax.ShapeDtypeStruct((B_PAD, LANE), jnp.float32),
                 jax.ShapeDtypeStruct((B_PAD, LANE), jnp.float32))
    out_specs = (pl.BlockSpec((B_PAD, LANE), lambda *_: (0, 0)),
                 pl.BlockSpec((B_PAD, LANE), lambda *_: (0, 0)))

    # Actual padded work done by the kernel (one 8x128x128 matmul, 3 transcendental
    # passes over one tile), not the previous 4x-overstated estimate.
    cost = pl.CostEstimate(
        flops=2 * B_PAD * K_PAD * LANE,
        transcendentals=3 * B_PAD * LANE,
        bytes_accessed=4 * (B_PAD * K_PAD + B_PAD * LANE
                            + K_PAD * LANE + 2 * B_PAD * LANE),
    )

    h_pad, c_pad = pl.pallas_call(
        lstm_cell_kernel,
        out_shape=out_shape,
        in_specs=in_specs,
        out_specs=out_specs,
        cost_estimate=cost,
    )(*operands)

    h_new = h_pad[:B, :HIDDEN_SIZE].astype(x.dtype)
    c_new = c_pad[:B, :HIDDEN_SIZE].astype(x.dtype)
    return h_new, c_new


def init_params(key):
    """Deterministic init matching PyTorch LSTMCell parameter shapes.

    PyTorch uses U(-k, k) with k = 1/sqrt(hidden_size).
    """
    k = 1.0 / jnp.sqrt(jnp.float32(HIDDEN_SIZE))
    k1, k2, k3, k4 = jax.random.split(key, 4)
    w_ih = jax.random.uniform(k1, (4 * HIDDEN_SIZE, INPUT_SIZE), jnp.float32, -k, k)
    w_hh = jax.random.uniform(k2, (4 * HIDDEN_SIZE, HIDDEN_SIZE), jnp.float32, -k, k)
    b_ih = jax.random.uniform(k3, (4 * HIDDEN_SIZE,), jnp.float32, -k, k)
    b_hh = jax.random.uniform(k4, (4 * HIDDEN_SIZE,), jnp.float32, -k, k)
    return w_ih, w_hh, b_ih, b_hh


if __name__ == "__main__":
    root = jax.random.PRNGKey(0)
    kp, kx, kh, kc = jax.random.split(root, 4)

    params = init_params(kp)
    # Hoisted packing: done once, outside the forward path.
    w_packed = pack_weights(params)                               # (128, 128)
    w_packed = jax.block_until_ready(w_packed)

    x = jax.random.normal(kx, (BATCH, INPUT_SIZE), jnp.float32)
    h0 = jax.random.normal(kh, (BATCH, HIDDEN_SIZE), jnp.float32)
    c0 = jax.random.normal(kc, (BATCH, HIDDEN_SIZE), jnp.float32)

    h_out, c_out = simple_lstm_forward(x, (h0, c0), w_packed)
    h_out = jax.block_until_ready(h_out)
    c_out = jax.block_until_ready(c_out)

    # Pure-JAX reference of the PyTorch LSTMCell math (gate order i, f, g, o).
    w_ih, w_hh, b_ih, b_hh = params
    H = HIDDEN_SIZE
    gates = x @ w_ih.T + h0 @ w_hh.T + b_ih + b_hh
    i_r = jax.nn.sigmoid(gates[:, 0 * H:1 * H])
    f_r = jax.nn.sigmoid(gates[:, 1 * H:2 * H])
    g_r = jnp.tanh(gates[:, 2 * H:3 * H])
    o_r = jax.nn.sigmoid(gates[:, 3 * H:4 * H])
    c_ref = f_r * c0 + i_r * g_r
    h_ref = o_r * jnp.tanh(c_ref)

    assert h_out.shape == (BATCH, HIDDEN_SIZE)
    assert c_out.shape == (BATCH, HIDDEN_SIZE)
    assert jnp.allclose(h_out, h_ref, atol=1e-4, rtol=1e-4), "h mismatch vs reference"
    assert jnp.allclose(c_out, c_ref, atol=1e-4, rtol=1e-4), "c mismatch vs reference"

    print("KERNEL_OK")
</pallas_src>

<mosaic_0001>
module attributes {stable_mosaic.version = 11 : i64} {
  func.func @lstm_cell_kernel(%arg0: memref<8x128xf32, #tpu.memory_space<vmem>>, %arg1: memref<8x128xf32, #tpu.memory_space<vmem>>, %arg2: memref<128x128xf32, #tpu.memory_space<vmem>>, %arg3: memref<8x128xf32, #tpu.memory_space<vmem>>, %arg4: memref<8x128xf32, #tpu.memory_space<vmem>>) attributes {dimension_semantics = [], scalar_prefetch = 0 : i64, scratch_operands = 0 : i64, tpu.core_type = #tpu.core_type<tc>} {
    %c0 = arith.constant 0 : index
    %c0_0 = arith.constant 0 : index
    %0 = vector.load %arg0[%c0, %c0_0] : memref<8x128xf32, #tpu.memory_space<vmem>>, vector<8x128xf32>
    %c0_1 = arith.constant 0 : index
    %c0_2 = arith.constant 0 : index
    %1 = vector.load %arg2[%c0_1, %c0_2] : memref<128x128xf32, #tpu.memory_space<vmem>>, vector<128x128xf32>
    %cst = arith.constant dense<0.000000e+00> : vector<8x128xf32>
    %2 = tpu.matmul %0, %1, %cst {dimension_numbers = #tpu.dot_dimension_numbers<[1], [0], [0], [1], [0, 0, 1, 1], [], []>} : vector<8x128xf32>, vector<128x128xf32>, vector<8x128xf32> -> vector<8x128xf32>
    %3 = tpu.iota {dimensions = array<i32: 1>} : vector<8x128xi32>
    %c64_i32 = arith.constant 64 : i32
    %4 = vector.broadcast %c64_i32 : i32 to vector<8x128xi32>
    %5 = arith.cmpi sge, %3, %4 : vector<8x128xi32>
    %c96_i32 = arith.constant 96 : i32
    %6 = vector.broadcast %c96_i32 : i32 to vector<8x128xi32>
    %7 = arith.cmpi slt, %3, %6 : vector<8x128xi32>
    %8 = arith.andi %5, %7 : vector<8x128xi1>
    %9 = math.tanh %2 : vector<8x128xf32>
    %10 = arith.negf %2 : vector<8x128xf32>
    %11 = math.exp %10 : vector<8x128xf32>
    %cst_3 = arith.constant 1.000000e+00 : f32
    %12 = vector.broadcast %cst_3 : f32 to vector<8x128xf32>
    %13 = arith.addf %12, %11 : vector<8x128xf32>
    %14 = arith.divf %12, %13 : vector<8x128xf32>
    %15 = arith.select %8, %9, %14 : vector<8x128xi1>, vector<8x128xf32>
    %c96_i32_4 = arith.constant 96 : i32
    %16 = tpu.dynamic_rotate %15 by %c96_i32_4 dim 1 : vector<8x128xf32>, i32 -> vector<8x128xf32>
    %c64_i32_5 = arith.constant 64 : i32
    %17 = tpu.dynamic_rotate %15 by %c64_i32_5 dim 1 : vector<8x128xf32>, i32 -> vector<8x128xf32>
    %c32_i32 = arith.constant 32 : i32
    %18 = tpu.dynamic_rotate %15 by %c32_i32 dim 1 : vector<8x128xf32>, i32 -> vector<8x128xf32>
    %c0_6 = arith.constant 0 : index
    %c0_7 = arith.constant 0 : index
    %19 = vector.load %arg1[%c0_6, %c0_7] : memref<8x128xf32, #tpu.memory_space<vmem>>, vector<8x128xf32>
    %20 = arith.mulf %16, %19 : vector<8x128xf32>
    %21 = arith.mulf %15, %17 : vector<8x128xf32>
    %22 = arith.addf %20, %21 : vector<8x128xf32>
    %23 = math.tanh %22 : vector<8x128xf32>
    %24 = arith.mulf %18, %23 : vector<8x128xf32>
    %c0_8 = arith.constant 0 : index
    %c0_9 = arith.constant 0 : index
    %25 = vector.load %arg3[%c0_8, %c0_9] : memref<8x128xf32, #tpu.memory_space<vmem>>, vector<8x128xf32>
    tpu.vector_store %arg3[%c0_8, %c0_9], %24 {strides = array<i32>} : memref<8x128xf32, #tpu.memory_space<vmem>>, vector<8x128xf32>,
    %c0_10 = arith.constant 0 : index
    %c0_11 = arith.constant 0 : index
    %26 = vector.load %arg4[%c0_10, %c0_11] : memref<8x128xf32, #tpu.memory_space<vmem>>, vector<8x128xf32>
    tpu.vector_store %arg4[%c0_10, %c0_11], %22 {strides = array<i32>} : memref<8x128xf32, #tpu.memory_space<vmem>>, vector<8x128xf32>,
    return
  }
}

</mosaic_0001>

<llo_original>
// kernel: simple_lstm_forward.1
$region0: #{simple_lstm_forward.1}
  #allocation0 [shape = 'u32[]', space=smem, size = 0x4, offset = 0x4, fixed_abs, tag = 'smem constant byte address 0x4 - core index']
  #allocation1 [shape = 'u32[144,128]{1,0:T(1,128)}', space=vmem, size = 0x12000, scoped, tag = 'internal scratch']
  %s0 = inlined_call_operand.vmem [shape: f32[8,128], index: 0, kind: input, shape index: {}]
  %s1 = inlined_call_operand.vmem [shape: f32[8,128], index: 1, kind: input, shape index: {}]
  %s2 = inlined_call_operand.hbm [shape: f32[128,128], index: 2, kind: input, shape index: {}]
  %s3 = inlined_call_operand.vmem [shape: f32[8,128], index: 3, kind: output, shape index: {0}]
  %s4 = inlined_call_operand.vmem [shape: f32[8,128], index: 4, kind: output, shape index: {1}]
  %5 = xla_tuple %s3, %s4
  %s6 = sld [smem:[#allocation0]]
  $region34: #{simple_lstm_forward.1} parent=0
    _
  %s8 = ssub.s32 1, %s6
  %s9 = scalar_select 0, %s8, %s6
  $region1: #{simple_lstm_forward.1} parent=0
    #allocation2 [shape = 'u8[65536]{0}', space=vmem, size = 0x10000, scoped, tag = 'input window, operand 2, single buffered']
    #allocation3 [shape = 's32[1]{0}', space=sflag, size = 0x4, scoped, tag = 'scoped memory for simple_lstm_forward.1']
    %10 = vsyncpa [#allocation3], 0
    // Predicated region
    $region2: #{simple_lstm_forward.1} parent=1 // pred_check
      _
    $region3: #{simple_lstm_forward.1} parent=1 // pred_check_branch
      %12 = sbr.rel (0) target = $region5
    $region4: #{simple_lstm_forward.1} parent=1 // pred_region
      _
    $region5: #{simple_lstm_forward.1} parent=1 // pred_fallthru
      _
    // Predicated region
    $region6: #{simple_lstm_forward.1} parent=1 // pred_check
      _
    $region7: #{simple_lstm_forward.1} parent=1 // pred_check_branch
      %14 = sbr.rel (0) target = $region9
    $region8: #{simple_lstm_forward.1} parent=1 // pred_region
      _
    $region9: #{simple_lstm_forward.1} parent=1 // pred_fallthru
      _
    // Predicated region
    $region10: #{simple_lstm_forward.1} parent=1 // pred_check
      _
    $region11: #{simple_lstm_forward.1} parent=1 // pred_check_branch
      %16 = sbr.rel (0) target = $region13
    $region12: #{simple_lstm_forward.1} parent=1 // pred_region
      %s18 = ssub.s32 2048, 2048
      %19 = vsyncadd [#allocation3], %s18
      %s20 = sshll.u32 [#allocation2], 4
      %s21 = int_to_ptr.vmem [resolvable:$true] %s20
      %26 = dma.hbm_to_vmem [thread:$0]  %s2, 2048, %s21, [#allocation3], 128, 128, 8
    $region13: #{simple_lstm_forward.1} parent=1 // pred_fallthru
      _
    // Predicated region
    $region14: #{simple_lstm_forward.1} parent=1 // pred_check
      _
    $region15: #{simple_lstm_forward.1} parent=1 // pred_check_branch
      %28 = sbr.rel (0) target = $region17
    $region16: #{simple_lstm_forward.1} parent=1 // pred_region
      %29 = dma.done [#allocation3], 2048
    $region17: #{simple_lstm_forward.1} parent=1 // pred_fallthru
      _
    %v30 = vld [vmem:[%s0] sm:$0xff]
    %v31 = vld [vmem:[#allocation2] sm:$0xff]
    %v32 = vld [vmem:[#allocation2 + $0x8] sm:$0xff]
    %v33 = vld [vmem:[#allocation2 + $0x10] sm:$0xff]
    %v34 = vld [vmem:[#allocation2 + $0x18] sm:$0xff]
    %v35 = vld [vmem:[#allocation2 + $0x20] sm:$0xff]
    %v36 = vld [vmem:[#allocation2 + $0x28] sm:$0xff]
    %v37 = vld [vmem:[#allocation2 + $0x30] sm:$0xff]
    %v38 = vld [vmem:[#allocation2 + $0x38] sm:$0xff]
    %v39 = vld [vmem:[#allocation2 + $0x40] sm:$0xff]
    %v40 = vld [vmem:[#allocation2 + $0x48] sm:$0xff]
    %v41 = vld [vmem:[#allocation2 + $0x50] sm:$0xff]
    %v42 = vld [vmem:[#allocation2 + $0x58] sm:$0xff]
    %v43 = vld [vmem:[#allocation2 + $0x60] sm:$0xff]
    %v44 = vld [vmem:[#allocation2 + $0x68] sm:$0xff]
    %v45 = vld [vmem:[#allocation2 + $0x70] sm:$0xff]
    %v46 = vld [vmem:[#allocation2 + $0x78] sm:$0xff]
    %47 = vmatprep.subr.mxu0 0.0
    %48 = vmatpush1.msra.mxu0 %v31
    %49 = vmatprep.subr.mxu0 0.0
    %50 = vmatpush1.msra.mxu0 %v32
    %51 = vmatprep.subr.mxu0 0.0
    %52 = vmatpush1.msra.mxu0 %v33
    %53 = vmatprep.subr.mxu0 0.0
    %54 = vmatpush1.msra.mxu0 %v34
    %55 = vmatprep.subr.mxu0 0.0
    %56 = vmatpush1.msra.mxu0 %v35
    %57 = vmatprep.subr.mxu0 0.0
    %58 = vmatpush1.msra.mxu0 %v36
    %59 = vmatprep.subr.mxu0 0.0
    %60 = vmatpush1.msra.mxu0 %v37
    %61 = vmatprep.subr.mxu0 0.0
    %62 = vmatpush1.msra.mxu0 %v38
    %63 = vmatprep.subr.mxu0 0.0
    %64 = vmatpush1.msra.mxu0 %v39
    %65 = vmatprep.subr.mxu0 0.0
    %66 = vmatpush1.msra.mxu0 %v40
    %67 = vmatprep.subr.mxu0 0.0
    %68 = vmatpush1.msra.mxu0 %v41
    %69 = vmatprep.subr.mxu0 0.0
    %70 = vmatpush1.msra.mxu0 %v42
    %71 = vmatprep.subr.mxu0 0.0
    %72 = vmatpush1.msra.mxu0 %v43
    %73 = vmatprep.subr.mxu0 0.0
    %74 = vmatpush1.msra.mxu0 %v44
    %75 = vmatprep.subr.mxu0 0.0
    %76 = vmatpush1.msra.mxu0 %v45
    %77 = vmatprep.subr.mxu0 0.0
    %78 = vmatpush1.msra.mxu0 %v46
    %79 = vmatprep.subr.mxu0 0.0
    %80 = vmatpush1.msra.mxu0 0.0
    %81 = vmatprep.subr.mxu0 0.0
    %82 = vmatpush1.msra.mxu0 0.0
    %83 = vmatprep.subr.mxu0 0.0
    %84 = vmatpush1.msra.mxu0 0.0
    %85 = vmatprep.subr.mxu0 0.0
    %86 = vmatpush1.msra.mxu0 0.0
    %87 = vmatprep.subr.mxu0 0.0
    %88 = vmatpush1.msra.mxu0 0.0
    %89 = vmatprep.subr.mxu0 0.0
    %90 = vmatpush1.msra.mxu0 0.0
    %91 = vmatprep.subr.mxu0 0.0
    %92 = vmatpush1.msra.mxu0 0.0
    %93 = vmatprep.subr.mxu0 0.0
    %94 = vmatpush1.msra.mxu0 0.0
    %95 = vmatprep.subr.mxu0 0.0
    %96 = vmatpush1.msra.mxu0 0.0
    %97 = vmatprep.subr.mxu0 0.0
    %98 = vmatpush1.msra.mxu0 0.0
    %99 = vmatprep.subr.mxu0 0.0
    %100 = vmatpush1.msra.mxu0 0.0
    %101 = vmatprep.subr.mxu0 0.0
    %102 = vmatpush1.msra.mxu0 0.0
    %103 = vmatprep.subr.mxu0 0.0
    %104 = vmatpush1.msra.mxu0 0.0
    %105 = vmatprep.subr.mxu0 0.0
    %106 = vmatpush1.msra.mxu0 0.0
    %107 = vmatprep.subr.mxu0 0.0
    %108 = vmatpush1.msra.mxu0 0.0
    %109 = vmatprep.subr.mxu0 0.0
    %110 = vmatpush1.msra.mxu0 0.0
    %111 = vmatprep.mubr.f32.mxu0 0.0
    %112 = vmatmul.mubr.f32.gmra.mrb[0].mxu0 %v30
    %v113 = vpop.f32.mrb[0].mxu0
    %v114 = vadd.f32 0.0, %v113
    %v115 = vpop.f32.mrb[0].mxu0
    %116 = vdwg.mxu0
    %v117 = vlaneseq
    %v118 = vand.u32 %v117, 127
    %vm119 = vcmp.ge.s32.totalorder %v118, 64
    %vm120 = vcmp.lt.s32.totalorder %v118, 96
    %vm121 = vmand %vm119, %vm120
    %v122 = vtanh.pop %v114
    %v123 = vxor.u32 %v114, 2147483648
    %v124 = vmul.f32 %v123, 1.442695
    %v125 = vpow.pop %v124
    %v126 = vadd.f32 %v125, 1.0
    %v127 = vrcp.pop %v126
    %v128 = vmul.f32 1.0, %v127
    %v129 = vsel %vm121, %v122, %v128
    %130 = vrot.lane.b32.xlu0 %v129, 96
    %v131 = vpop.permute.xlu0 %130
    %132 = vrot.lane.b32.xlu0 %v129, 64
    %v133 = vpop.permute.xlu0 %132
    %134 = vrot.lane.b32.xlu0 %v129, 32
    %v135 = vpop.permute.xlu0 %134
    %v136 = vld [vmem:[%s1] sm:$0xff]
    %v137 = vmul.f32 %v131, %v136
    %v138 = vmul.f32 %v129, %v133
    %v139 = vadd.f32 %v137, %v138
    %v140 = vtanh.pop %v139
    %v141 = vmul.f32 %v135, %v140
    %142 = vst [vmem:[%s3] sm:$0xff] %v141
    %143 = vst [vmem:[%s4] sm:$0xff] %v139
    // Predicated region
    $region18: #{simple_lstm_forward.1} parent=1 // pred_check
      _
    $region19: #{simple_lstm_forward.1} parent=1 // pred_check_branch
      %145 = sbr.rel (0) target = $region21
    $region20: #{simple_lstm_forward.1} parent=1 // pred_region
      _
    $region21: #{simple_lstm_forward.1} parent=1 // pred_fallthru
      _
    // Predicated region
    $region22: #{simple_lstm_forward.1} parent=1 // pred_check
      _
    $region23: #{simple_lstm_forward.1} parent=1 // pred_check_branch
      %147 = sbr.rel (0) target = $region25
    $region24: #{simple_lstm_forward.1} parent=1 // pred_region
      _
    $region25: #{simple_lstm_forward.1} parent=1 // pred_fallthru
      _
    // Predicated region
    $region26: #{simple_lstm_forward.1} parent=1 // pred_check
      _
    $region27: #{simple_lstm_forward.1} parent=1 // pred_check_branch
      %149 = sbr.rel (0) target = $region29
    $region28: #{simple_lstm_forward.1} parent=1 // pred_region
      _
    $region29: #{simple_lstm_forward.1} parent=1 // pred_fallthru
      _
    // Predicated region
    $region30: #{simple_lstm_forward.1} parent=1 // pred_check
      _
    $region31: #{simple_lstm_forward.1} parent=1 // pred_check_branch
      %151 = sbr.rel (0) target = $region33
    $region32: #{simple_lstm_forward.1} parent=1 // pred_region
      _
    $region33: #{simple_lstm_forward.1} parent=1 // pred_fallthru
      _
    %152 = vsyncpa [#allocation3], 1

</llo_original>
